<compile_context>
chip_gen: v7x
topology: tpu7x:2x2x1
jax: 0.10.0
libtpu: 0.0.40
codegen_flags: <defaults>
</compile_context>

<pallas_src>
import functools

import jax
import jax.numpy as jnp
from jax.experimental import pallas as pl
from jax.experimental.pallas import tpu as pltpu

CONFIG = [4, 64, 64, 1]


def _round_up(n, m):
    return ((n + m - 1) // m) * m


def _device_tuning():
    """Per-generation defaults: (block_b, vmem_limit_bytes, bf16_activations)."""
    try:
        kind = jax.devices()[0].device_kind.lower()
    except Exception:
        kind = ""
    old_gen = any(t in kind for t in ("v2", "v3", "v4", "v5"))  # no bf16 VPU/EUP
    is_v7 = "7" in kind                                          # 64 MiB VMEM / TC
    block_b = 8192
    vmem_limit = (48 if is_v7 else 64) * 1024 * 1024
    return block_b, vmem_limit, (not old_gen)


def _mlp_kernel(x_ref, w1_ref, b1_ref, w2_ref, b2_ref, w3_ref, b3_ref, o_ref,
                *, act_bf16):
    # x_ref : [BT, 4]  f32   (natural PyTorch layout; no host transpose / pad)
    # w1    : [64, 4]  f32   b1: [64, 1] f32
    # w2    : [64, 64] bf16  b2: [64, 1] f32
    # w3    : [64, 1]  f32   b3: [1] f32 (SMEM scalar)
    # o_ref : [1, BT]  f32   (batch on the lane axis -> dense stores)
    act_dtype = jnp.bfloat16 if act_bf16 else jnp.float32

    # Layer 1: Linear(4 -> 64).  Contract the size-4 feature axis directly
    # (A @ B^T dot_general), producing h with batch on lanes, in f32 (K=4 is
    # nearly free on the MXU and keeps layer-1 numerics tight).
    h = jax.lax.dot_general(
        w1_ref[...], x_ref[...],
        dimension_numbers=(((1,), (1,)), ((), ())),
        preferred_element_type=jnp.float32)                      # [64, BT]
    h = jnp.tanh((h + b1_ref[...]).astype(act_dtype))

    # Layer 2: Linear(64 -> 64) — the only real matmul; bf16 MXU, f32 acc.
    h = jnp.dot(w2_ref[...], h.astype(jnp.bfloat16),
                preferred_element_type=jnp.float32)              # [64, BT]
    h = jnp.tanh((h + b2_ref[...]).astype(act_dtype))

    # Layer 3: Linear(64 -> 1) on the VPU/XLU (broadcast multiply + sublane
    # reduce) instead of streaming another K=64, M=1 matmul through the MXU.
    out = jnp.sum(w3_ref[...] * h.astype(jnp.float32),
                  axis=0, keepdims=True)                         # [1, BT]
    o_ref[...] = (out + b3_ref[0]).astype(o_ref.dtype)


def mlp_forward(x, params, *, block_b=None):
    """x: [B, 4] float32; params: list of (W[out,in], b[out]) for the 3 layers."""
    (w1, b1), (w2, b2), (w3, b3) = params
    B, in_dim = x.shape

    default_block, vmem_limit, act_bf16 = _device_tuning()
    if block_b is None:
        block_b = default_block
    # Prefer >= 2 grid steps when the batch allows (keeps both v7x TensorCores
    # busy on the "parallel" axis), but never exceed the batch itself.
    block_b = min(block_b, max(128, _round_up(pl.cdiv(B, 2), 128)))
    if block_b >= B:
        block_b = B
    nb = pl.cdiv(B, block_b)

    # Parameter dtypes: bf16 only for the layer-2 MXU weights.
    w1f = w1.astype(jnp.float32)                     # [64, 4]
    w2b = w2.astype(jnp.bfloat16)                    # [64, 64]
    b1c = b1.reshape(-1, 1).astype(jnp.float32)      # [64, 1]
    b2c = b2.reshape(-1, 1).astype(jnp.float32)      # [64, 1]
    w3c = w3.reshape(-1, 1).astype(jnp.float32)      # [64, 1]
    b3c = b3.reshape(1).astype(jnp.float32)          # [1]  -> SMEM scalar

    # Parameters: whole-array blocks, constant index_map => VMEM-resident
    # across all grid steps (no re-DMA).
    resident = lambda a: pl.BlockSpec(a.shape, lambda i: (0,) * a.ndim)

    out = pl.pallas_call(
        functools.partial(_mlp_kernel, act_bf16=act_bf16),
        out_shape=jax.ShapeDtypeStruct((1, B), jnp.float32),
        grid=(nb,),
        in_specs=[
            pl.BlockSpec((block_b, in_dim), lambda i: (i, 0)),   # x tile (ragged ok)
            resident(w1f), resident(b1c),
            resident(w2b), resident(b2c),
            resident(w3c),
            pl.BlockSpec(memory_space=pltpu.MemorySpace.SMEM),   # b3 scalar
        ],
        out_specs=pl.BlockSpec((1, block_b), lambda i: (0, i)),
        compiler_params=pltpu.CompilerParams(
            dimension_semantics=("parallel",),
            vmem_limit_bytes=vmem_limit),
    )(x, w1f, b1c, w2b, b2c, w3c, b3c)

    return out.reshape(B, 1)                         # [B, 1]


def init_params(key, config):
    """PyTorch nn.Linear default init: U(-1/sqrt(fan_in), 1/sqrt(fan_in))."""
    params = []
    for fan_in, fan_out in zip(config[:-1], config[1:]):
        kw, kb, key = jax.random.split(key, 3)
        bound = 1.0 / (fan_in ** 0.5)
        w = jax.random.uniform(kw, (fan_out, fan_in), jnp.float32, -bound, bound)
        b = jax.random.uniform(kb, (fan_out,), jnp.float32, -bound, bound)
        params.append((w, b))
    return params


def mlp_reference(x, params):
    (w1, b1), (w2, b2), (w3, b3) = params
    h = jnp.tanh(x @ w1.T + b1)
    h = jnp.tanh(h @ w2.T + b2)
    return h @ w3.T + b3


if __name__ == "__main__":
    key = jax.random.PRNGKey(0)
    kx, kp = jax.random.split(key)
    params = init_params(kp, CONFIG)

    # Small batch (single exact block) + a non-multiple batch (2 ragged blocks).
    for batch in (8, 389):
        xb = jax.random.normal(jax.random.fold_in(kx, batch),
                               (batch, CONFIG[0]), jnp.float32)
        out = jax.block_until_ready(mlp_forward(xb, params))
        ref = mlp_reference(xb, params)
        assert out.shape == (batch, CONFIG[-1])
        # bf16 layer-2 matmul (+ optional bf16 activations) -> loose tolerance.
        max_err = float(jnp.max(jnp.abs(out - ref)))
        assert max_err < 5e-2, f"batch={batch}: max abs err {max_err}"
    print("KERNEL_OK")
</pallas_src>

<mosaic_0001>
module attributes {stable_mosaic.version = 11 : i64} {
  func.func @_mlp_kernel(%arg0: i32, %arg1: memref<8x4xf32, #tpu.memory_space<vmem>>, %arg2: memref<64x4xf32, #tpu.memory_space<vmem>>, %arg3: memref<64x1xf32, #tpu.memory_space<vmem>>, %arg4: memref<64x64xbf16, #tpu.memory_space<vmem>>, %arg5: memref<64x1xf32, #tpu.memory_space<vmem>>, %arg6: memref<64x1xf32, #tpu.memory_space<vmem>>, %arg7: memref<1xf32, #tpu.memory_space<smem>>, %arg8: memref<1x8xf32, #tpu.memory_space<vmem>>) attributes {dimension_semantics = [#tpu.dimension_semantics<parallel>], iteration_bounds = array<i64: 1>, scalar_prefetch = 0 : i64, scratch_operands = 0 : i64, tpu.core_type = #tpu.core_type<tc>, window_params = [{transform_indices = @transform_0, window_bounds = array<i64: 8, 4>}, {pipeline_mode = #tpu.pipeline_mode<synchronous>, transform_indices = @transform_1, window_bounds = array<i64: 64, 4>}, {pipeline_mode = #tpu.pipeline_mode<synchronous>, transform_indices = @transform_2, window_bounds = array<i64: 64, 1>}, {pipeline_mode = #tpu.pipeline_mode<synchronous>, transform_indices = @transform_3, window_bounds = array<i64: 64, 64>}, {pipeline_mode = #tpu.pipeline_mode<synchronous>, transform_indices = @transform_4, window_bounds = array<i64: 64, 1>}, {pipeline_mode = #tpu.pipeline_mode<synchronous>, transform_indices = @transform_5, window_bounds = array<i64: 64, 1>}, {transform_indices = @transform_6, window_bounds = array<i64: 1>}, {transform_indices = @transform_7, window_bounds = array<i64: 1, 8>}]} {
    %c0 = arith.constant 0 : index
    %c0_0 = arith.constant 0 : index
    %0 = vector.load %arg2[%c0, %c0_0] : memref<64x4xf32, #tpu.memory_space<vmem>>, vector<64x4xf32>
    %c0_1 = arith.constant 0 : index
    %c0_2 = arith.constant 0 : index
    %1 = vector.load %arg1[%c0_1, %c0_2] : memref<8x4xf32, #tpu.memory_space<vmem>>, vector<8x4xf32>
    %cst = arith.constant dense<0.000000e+00> : vector<64x8xf32>
    %2 = tpu.matmul %0, %1, %cst {dimension_numbers = #tpu.dot_dimension_numbers<[1], [1], [0], [0], [0, 0, 1, 0], [], []>} : vector<64x4xf32>, vector<8x4xf32>, vector<64x8xf32> -> vector<64x8xf32>
    %c0_3 = arith.constant 0 : index
    %c0_4 = arith.constant 0 : index
    %3 = vector.load %arg3[%c0_3, %c0_4] : memref<64x1xf32, #tpu.memory_space<vmem>>, vector<64x1xf32>
    %4 = vector.broadcast %3 : vector<64x1xf32> to vector<64x8xf32>
    %5 = arith.addf %2, %4 : vector<64x8xf32>
    %6 = arith.truncf %5 : vector<64x8xf32> to vector<64x8xbf16>
    %7 = math.tanh %6 : vector<64x8xbf16>
    %c0_5 = arith.constant 0 : index
    %c0_6 = arith.constant 0 : index
    %8 = vector.load %arg4[%c0_5, %c0_6] : memref<64x64xbf16, #tpu.memory_space<vmem>>, vector<64x64xbf16>
    %cst_7 = arith.constant dense<0.000000e+00> : vector<64x8xf32>
    %9 = tpu.matmul %8, %7, %cst_7 {dimension_numbers = #tpu.dot_dimension_numbers<[1], [0], [0], [1], [0, 0, 1, 1], [], []>} : vector<64x64xbf16>, vector<64x8xbf16>, vector<64x8xf32> -> vector<64x8xf32>
    %c0_8 = arith.constant 0 : index
    %c0_9 = arith.constant 0 : index
    %10 = vector.load %arg5[%c0_8, %c0_9] : memref<64x1xf32, #tpu.memory_space<vmem>>, vector<64x1xf32>
    %11 = vector.broadcast %10 : vector<64x1xf32> to vector<64x8xf32>
    %12 = arith.addf %9, %11 : vector<64x8xf32>
    %13 = arith.truncf %12 : vector<64x8xf32> to vector<64x8xbf16>
    %14 = math.tanh %13 : vector<64x8xbf16>
    %c0_10 = arith.constant 0 : index
    %c0_11 = arith.constant 0 : index
    %15 = vector.load %arg6[%c0_10, %c0_11] : memref<64x1xf32, #tpu.memory_space<vmem>>, vector<64x1xf32>
    %16 = arith.extf %14 : vector<64x8xbf16> to vector<64x8xf32>
    %17 = vector.broadcast %15 : vector<64x1xf32> to vector<64x8xf32>
    %18 = arith.mulf %17, %16 : vector<64x8xf32>
    %cst_12 = arith.constant dense<0.000000e+00> : vector<8xf32>
    %19 = vector.multi_reduction <add>, %18, %cst_12 [0] : vector<64x8xf32> to vector<8xf32>
    %20 = vector.shape_cast %19 : vector<8xf32> to vector<1x8xf32>
    %c0_13 = arith.constant 0 : index
    %21 = memref.load %arg7[%c0_13] : memref<1xf32, #tpu.memory_space<smem>>
    %22 = vector.broadcast %21 : f32 to vector<1x8xf32>
    %23 = arith.addf %20, %22 : vector<1x8xf32>
    %c0_14 = arith.constant 0 : index
    %c0_15 = arith.constant 0 : index
    %24 = vector.load %arg8[%c0_14, %c0_15] : memref<1x8xf32, #tpu.memory_space<vmem>>, vector<1x8xf32>
    tpu.vector_store %arg8[%c0_14, %c0_15], %23 {strides = array<i32>} : memref<1x8xf32, #tpu.memory_space<vmem>>, vector<1x8xf32>,
    return
  }
  func.func @transform_0(%arg0: i32) -> (i32, i32) {
    %c0_i32 = arith.constant 0 : i32
    %c0_i32_0 = arith.constant 0 : i32
    return %arg0, %c0_i32 : i32, i32
  }
  func.func @transform_1(%arg0: i32) -> (i32, i32) {
    %c0_i32 = arith.constant 0 : i32
    %c0_i32_0 = arith.constant 0 : i32
    %c0_i32_1 = arith.constant 0 : i32
    return %c0_i32, %c0_i32_0 : i32, i32
  }
  func.func @transform_2(%arg0: i32) -> (i32, i32) {
    %c0_i32 = arith.constant 0 : i32
    %c0_i32_0 = arith.constant 0 : i32
    %c0_i32_1 = arith.constant 0 : i32
    return %c0_i32, %c0_i32_0 : i32, i32
  }
  func.func @transform_3(%arg0: i32) -> (i32, i32) {
    %c0_i32 = arith.constant 0 : i32
    %c0_i32_0 = arith.constant 0 : i32
    %c0_i32_1 = arith.constant 0 : i32
    return %c0_i32, %c0_i32_0 : i32, i32
  }
  func.func @transform_4(%arg0: i32) -> (i32, i32) {
    %c0_i32 = arith.constant 0 : i32
    %c0_i32_0 = arith.constant 0 : i32
    %c0_i32_1 = arith.constant 0 : i32
    return %c0_i32, %c0_i32_0 : i32, i32
  }
  func.func @transform_5(%arg0: i32) -> (i32, i32) {
    %c0_i32 = arith.constant 0 : i32
    %c0_i32_0 = arith.constant 0 : i32
    %c0_i32_1 = arith.constant 0 : i32
    return %c0_i32, %c0_i32_0 : i32, i32
  }
  func.func @transform_6(%arg0: i32) -> i32 {
    %c0_i32 = arith.constant 0 : i32
    %c0_i32_0 = arith.constant 0 : i32
    return %c0_i32 : i32
  }
  func.func @transform_7(%arg0: i32) -> (i32, i32) {
    %c0_i32 = arith.constant 0 : i32
    %c0_i32_0 = arith.constant 0 : i32
    return %c0_i32, %arg0 : i32, i32
  }
}

</mosaic_0001>

<llo_original>
// kernel: tpu_custom_call.1
$region0: #{tpu_custom_call.1}
  #allocation0 [shape = 'u32[]', space=smem, size = 0x4, offset = 0x4, fixed_abs, tag = 'smem constant byte address 0x4 - core index']
  #allocation1 [shape = 'u32[144,128]{1,0:T(1,128)}', space=vmem, size = 0x12000, scoped, tag = 'internal scratch']
  #allocation2 [shape = 'f32[1]{0:T(128)S(6)}', space=smem, size = 0x200, scoped, tag = 'scoped memory for tpu_custom_call.1']
  %s0 = inlined_call_operand.hbm [shape: f32[8,4], index: 0, kind: input, shape index: {}]
  %s1 = inlined_call_operand.hbm [shape: f32[64,4], index: 1, kind: input, shape index: {}]
  %s2 = inlined_call_operand.hbm [shape: f32[64,1], index: 2, kind: input, shape index: {}]
  %s3 = inlined_call_operand.hbm [shape: bf16[64,64], index: 3, kind: input, shape index: {}]
  %s4 = inlined_call_operand.hbm [shape: f32[64,1], index: 4, kind: input, shape index: {}]
  %s5 = inlined_call_operand.hbm [shape: f32[64,1], index: 5, kind: input, shape index: {}]
  %s6 = inlined_call_operand.<no memory space> [shape: f32[1], index: 6, kind: input, shape index: {}]
  %s7 = inlined_call_operand.hbm [shape: f32[1,8], index: 7, kind: output, shape index: {}]
  %s8 = sld [smem:[#allocation0]]
  $region62: #{tpu_custom_call.1} parent=0
    _
  %s10 = ssub.s32 1, %s8
  %s11 = scalar_select 0, %s10, %s8
  %12 = sst [smem:[#allocation2]] %s6
  $region1: #{tpu_custom_call.1} parent=0
    #allocation3 [shape = 'u8[4096]{0}', space=vmem, size = 0x1000, scoped, tag = 'input window, operand 0, single buffered']
    #allocation4 [shape = 's32[1]{0}', space=sflag, size = 0x4, scoped, tag = 'scoped memory for tpu_custom_call.1']
    #allocation5 [shape = 's32[1]{0}', space=sflag, size = 0x4, scoped, tag = 'scoped memory for tpu_custom_call.1']
    #allocation6 [shape = 'u8[32768]{0}', space=vmem, size = 0x8000, scoped, tag = 'input window, operand 1, single buffered']
    #allocation7 [shape = 's32[1]{0}', space=sflag, size = 0x4, scoped, tag = 'scoped memory for tpu_custom_call.1']
    #allocation8 [shape = 'u8[32768]{0}', space=vmem, size = 0x8000, scoped, tag = 'input window, operand 2, single buffered']
    #allocation9 [shape = 'u8[16384]{0}', space=vmem, size = 0x4000, scoped, tag = 'input window, operand 3, single buffered']
    #allocation10 [shape = 's32[1]{0}', space=sflag, size = 0x4, scoped, tag = 'scoped memory for tpu_custom_call.1']
    #allocation11 [shape = 'u8[32768]{0}', space=vmem, size = 0x8000, scoped, tag = 'input window, operand 4, single buffered']
    #allocation12 [shape = 'u8[32768]{0}', space=vmem, size = 0x8000, scoped, tag = 'input window, operand 5, single buffered']
    #allocation13 [shape = 's32[1]{0}', space=sflag, size = 0x4, scoped, tag = 'scoped memory for tpu_custom_call.1']
    #allocation14 [shape = 'u8[512]{0}', space=vmem, size = 0x400, scoped, tag = 'output window, operand 0, single buffered']
    %13 = vsyncpa [#allocation4], 0
    %14 = vsyncpa [#allocation7], 0
    %15 = vsyncpa [#allocation10], 0
    %16 = vsyncpa [#allocation13], 0
    %17 = vsyncpa [#allocation5], 0
    // Predicated region
    $region2: #{tpu_custom_call.1} parent=1 // pred_check
      _
    $region3: #{tpu_custom_call.1} parent=1 // pred_check_branch
      %19 = sbr.rel (0) target = $region5
    $region4: #{tpu_custom_call.1} parent=1 // pred_region
      %s21 = ssub.s32 128, 128
      %22 = vsyncadd [#allocation4], %s21
      %s24 = sshll.u32 [#allocation3], 4
      %s25 = int_to_ptr.vmem [resolvable:$true] %s24
      %27 = dma.hbm_to_vmem [thread:$0]  %s0, 128, %s25, [#allocation4]
    $region5: #{tpu_custom_call.1} parent=1 // pred_fallthru
      _
    // Predicated region
    $region6: #{tpu_custom_call.1} parent=1 // pred_check
      _
    $region7: #{tpu_custom_call.1} parent=1 // pred_check_branch
      %29 = sbr.rel (0) target = $region9
    $region8: #{tpu_custom_call.1} parent=1 // pred_region
      %s31 = ssub.s32 1024, 1024
      %32 = vsyncadd [#allocation7], %s31
      %s33 = sshll.u32 [#allocation6], 4
      %s34 = int_to_ptr.vmem [resolvable:$true] %s33
      %39 = dma.hbm_to_vmem [thread:$0]  %s1, 1024, %s34, [#allocation7], 128, 128, 8
    $region9: #{tpu_custom_call.1} parent=1 // pred_fallthru
      _
    // Predicated region
    $region10: #{tpu_custom_call.1} parent=1 // pred_check
      _
    $region11: #{tpu_custom_call.1} parent=1 // pred_check_branch
      %41 = sbr.rel (0) target = $region13
    $region12: #{tpu_custom_call.1} parent=1 // pred_region
      %s43 = ssub.s32 1024, 1024
      %44 = vsyncadd [#allocation7], %s43
      %s45 = sshll.u32 [#allocation8], 4
      %s46 = int_to_ptr.vmem [resolvable:$true] %s45
      %51 = dma.hbm_to_vmem [thread:$0]  %s2, 1024, %s46, [#allocation7], 128, 128, 8
    $region13: #{tpu_custom_call.1} parent=1 // pred_fallthru
      _
    // Predicated region
    $region14: #{tpu_custom_call.1} parent=1 // pred_check
      _
    $region15: #{tpu_custom_call.1} parent=1 // pred_check_branch
      %53 = sbr.rel (0) target = $region17
    $region16: #{tpu_custom_call.1} parent=1 // pred_region
      %s55 = ssub.s32 512, 512
      %56 = vsyncadd [#allocation10], %s55
      %s57 = sshll.u32 [#allocation9], 4
      %s58 = int_to_ptr.vmem [resolvable:$true] %s57
      %63 = dma.hbm_to_vmem [thread:$0]  %s3, 512, %s58, [#allocation10], 64, 64, 4
    $region17: #{tpu_custom_call.1} parent=1 // pred_fallthru
      _
    // Predicated region
    $region18: #{tpu_custom_call.1} parent=1 // pred_check
      _
    $region19: #{tpu_custom_call.1} parent=1 // pred_check_branch
      %65 = sbr.rel (0) target = $region21
    $region20: #{tpu_custom_call.1} parent=1 // pred_region
      %s67 = ssub.s32 1024, 1024
      %68 = vsyncadd [#allocation10], %s67
      %s69 = sshll.u32 [#allocation11], 4
      %s70 = int_to_ptr.vmem [resolvable:$true] %s69
      %75 = dma.hbm_to_vmem [thread:$0]  %s4, 1024, %s70, [#allocation10], 128, 128, 8
    $region21: #{tpu_custom_call.1} parent=1 // pred_fallthru
      _
    // Predicated region
    $region22: #{tpu_custom_call.1} parent=1 // pred_check
      _
    $region23: #{tpu_custom_call.1} parent=1 // pred_check_branch
      %77 = sbr.rel (0) target = $region25
    $region24: #{tpu_custom_call.1} parent=1 // pred_region
      %s79 = ssub.s32 1024, 1024
      %80 = vsyncadd [#allocation13], %s79
      %s81 = sshll.u32 [#allocation12], 4
      %s82 = int_to_ptr.vmem [resolvable:$true] %s81
      %87 = dma.hbm_to_vmem [thread:$0]  %s5, 1024, %s82, [#allocation13], 128, 128, 8
    $region25: #{tpu_custom_call.1} parent=1 // pred_fallthru
      _
    // Predicated region
    $region26: #{tpu_custom_call.1} parent=1 // pred_check
      _
    $region27: #{tpu_custom_call.1} parent=1 // pred_check_branch
      %89 = sbr.rel (0) target = $region29
    $region28: #{tpu_custom_call.1} parent=1 // pred_region
      _
    $region29: #{tpu_custom_call.1} parent=1 // pred_fallthru
      _
    // Predicated region
    $region30: #{tpu_custom_call.1} parent=1 // pred_check
      _
    $region31: #{tpu_custom_call.1} parent=1 // pred_check_branch
      %91 = sbr.rel (0) target = $region33
    $region32: #{tpu_custom_call.1} parent=1 // pred_region
      %92 = dma.done [#allocation4], 128
    $region33: #{tpu_custom_call.1} parent=1 // pred_fallthru
      _
    // Predicated region
    $region34: #{tpu_custom_call.1} parent=1 // pred_check
      _
    $region35: #{tpu_custom_call.1} parent=1 // pred_check_branch
      %94 = sbr.rel (0) target = $region37
    $region36: #{tpu_custom_call.1} parent=1 // pred_region
      %95 = dma.done [#allocation7], 1024
    $region37: #{tpu_custom_call.1} parent=1 // pred_fallthru
      _
    // Predicated region
    $region38: #{tpu_custom_call.1} parent=1 // pred_check
      _
    $region39: #{tpu_custom_call.1} parent=1 // pred_check_branch
      %97 = sbr.rel (0) target = $region41
    $region40: #{tpu_custom_call.1} parent=1 // pred_region
      %98 = dma.done [#allocation7], 1024
    $region41: #{tpu_custom_call.1} parent=1 // pred_fallthru
      _
    // Predicated region
    $region42: #{tpu_custom_call.1} parent=1 // pred_check
      _
    $region43: #{tpu_custom_call.1} parent=1 // pred_check_branch
      %100 = sbr.rel (0) target = $region45
    $region44: #{tpu_custom_call.1} parent=1 // pred_region
      %101 = dma.done [#allocation10], 512
    $region45: #{tpu_custom_call.1} parent=1 // pred_fallthru
      _
    // Predicated region
    $region46: #{tpu_custom_call.1} parent=1 // pred_check
      _
    $region47: #{tpu_custom_call.1} parent=1 // pred_check_branch
      %103 = sbr.rel (0) target = $region49
    $region48: #{tpu_custom_call.1} parent=1 // pred_region
      %104 = dma.done [#allocation10], 1024
    $region49: #{tpu_custom_call.1} parent=1 // pred_fallthru
      _
    // Predicated region
    $region50: #{tpu_custom_call.1} parent=1 // pred_check
      _
    $region51: #{tpu_custom_call.1} parent=1 // pred_check_branch
      %106 = sbr.rel (0) target = $region53
    $region52: #{tpu_custom_call.1} parent=1 // pred_region
      %107 = dma.done [#allocation13], 1024
    $region53: #{tpu_custom_call.1} parent=1 // pred_fallthru
      _
    %v109 = vld [vmem:[#allocation6] sm:$0xff]
    %v110 = vld [vmem:[#allocation6 + $0x8] sm:$0xff]
    %v111 = vld [vmem:[#allocation6 + $0x10] sm:$0xff]
    %v112 = vld [vmem:[#allocation6 + $0x18] sm:$0xff]
    %v113 = vld [vmem:[#allocation6 + $0x20] sm:$0xff]
    %v114 = vld [vmem:[#allocation6 + $0x28] sm:$0xff]
    %v115 = vld [vmem:[#allocation6 + $0x30] sm:$0xff]
    %v116 = vld [vmem:[#allocation6 + $0x38] sm:$0xff]
    %v117 = vld [vmem:[#allocation3] sm:$0xff]
    %v118 = vld [vmem:[#allocation8] sm:$0xff]
    %v119 = vld [vmem:[#allocation8 + $0x8] sm:$0xff]
    %v120 = vld [vmem:[#allocation8 + $0x10] sm:$0xff]
    %v121 = vld [vmem:[#allocation8 + $0x18] sm:$0xff]
    %v122 = vld [vmem:[#allocation8 + $0x20] sm:$0xff]
    %v123 = vld [vmem:[#allocation8 + $0x28] sm:$0xff]
    %v124 = vld [vmem:[#allocation8 + $0x30] sm:$0xff]
    %v125 = vld [vmem:[#allocation8 + $0x38] sm:$0xff]
    %127 = vset.pattern.permute.xlu0 0
    %128 = vperm.xlu0 %127, %v118
    %v129 = vpop.permute.xlu0 %128
    %132 = vset.pattern.permute.xlu0 0
    %133 = vperm.xlu0 %132, %v119
    %v134 = vpop.permute.xlu0 %133
    %137 = vset.pattern.permute.xlu0 0
    %138 = vperm.xlu0 %137, %v120
    %v139 = vpop.permute.xlu0 %138
    %142 = vset.pattern.permute.xlu0 0
    %143 = vperm.xlu0 %142, %v121
    %v144 = vpop.permute.xlu0 %143
    %147 = vset.pattern.permute.xlu0 0
    %148 = vperm.xlu0 %147, %v122
    %v149 = vpop.permute.xlu0 %148
    %152 = vset.pattern.permute.xlu0 0
    %153 = vperm.xlu0 %152, %v123
    %v154 = vpop.permute.xlu0 %153
    %157 = vset.pattern.permute.xlu0 0
    %158 = vperm.xlu0 %157, %v124
    %v159 = vpop.permute.xlu0 %158
    %162 = vset.pattern.permute.xlu0 0
    %163 = vperm.xlu0 %162, %v125
    %v164 = vpop.permute.xlu0 %163
    %vm166 = vcmask 31744
    %v168 = vsel %vm166, %v109, 0
    %v171 = vsel %vm166, %v110, 0
    %v174 = vsel %vm166, %v111, 0
    %v177 = vsel %vm166, %v112, 0
    %v180 = vsel %vm166, %v113, 0
    %v183 = vsel %vm166, %v114, 0
    %v186 = vsel %vm166, %v115, 0
    %v189 = vsel %vm166, %v116, 0
    %v192 = vsel %vm166, %v117, 0
    %194 = vmatprep.subr.mxu0 0.0
    %195 = vmatpush1.xpose.msra.mxu0 %v192
    %196 = vmatprep.subr.mxu0 0.0
    %197 = vmatpush1.xpose.msra.mxu0 0.0
    %198 = vmatprep.subr.mxu0 0.0
    %199 = vmatpush1.xpose.msra.mxu0 0.0
    %200 = vmatprep.subr.mxu0 0.0
    %201 = vmatpush1.xpose.msra.mxu0 0.0
    %202 = vmatprep.subr.mxu0 0.0
    %203 = vmatpush1.xpose.msra.mxu0 0.0
    %204 = vmatprep.subr.mxu0 0.0
    %205 = vmatpush1.xpose.msra.mxu0 0.0
    %206 = vmatprep.subr.mxu0 0.0
    %207 = vmatpush1.xpose.msra.mxu0 0.0
    %208 = vmatprep.subr.mxu0 0.0
    %209 = vmatpush1.xpose.msra.mxu0 0.0
    %210 = vmatprep.subr.mxu0 0.0
    %211 = vmatpush1.xpose.msra.mxu0 0.0
    %212 = vmatprep.subr.mxu0 0.0
    %213 = vmatpush1.xpose.msra.mxu0 0.0
    %214 = vmatprep.subr.mxu0 0.0
    %215 = vmatpush1.xpose.msra.mxu0 0.0
    %216 = vmatprep.subr.mxu0 0.0
    %217 = vmatpush1.xpose.msra.mxu0 0.0
    %218 = vmatprep.subr.mxu0 0.0
    %219 = vmatpush1.xpose.msra.mxu0 0.0
    %220 = vmatprep.subr.mxu0 0.0
    %221 = vmatpush1.xpose.msra.mxu0 0.0
    %222 = vmatprep.subr.mxu0 0.0
    %223 = vmatpush1.xpose.msra.mxu0 0.0
    %224 = vmatprep.subr.mxu0 0.0
    %225 = vmatpush1.xpose.msra.mxu0 0.0
    %226 = vmatprep.subr.mxu0 0.0
    %227 = vmatpush1.xpose.msra.mxu0 0.0
    %228 = vmatprep.subr.mxu0 0.0
    %229 = vmatpush1.xpose.msra.mxu0 0.0
    %230 = vmatprep.subr.mxu0 0.0
    %231 = vmatpush1.xpose.msra.mxu0 0.0
    %232 = vmatprep.subr.mxu0 0.0
    %233 = vmatpush1.xpose.msra.mxu0 0.0
    %234 = vmatprep.subr.mxu0 0.0
    %235 = vmatpush1.xpose.msra.mxu0 0.0
    %236 = vmatprep.subr.mxu0 0.0
    %237 = vmatpush1.xpose.msra.mxu0 0.0
    %238 = vmatprep.subr.mxu0 0.0
    %239 = vmatpush1.xpose.msra.mxu0 0.0
    %240 = vmatprep.subr.mxu0 0.0
    %241 = vmatpush1.xpose.msra.mxu0 0.0
    %242 = vmatprep.subr.mxu0 0.0
    %243 = vmatpush1.xpose.msra.mxu0 0.0
    %244 = vmatprep.subr.mxu0 0.0
    %245 = vmatpush1.xpose.msra.mxu0 0.0
    %246 = vmatprep.subr.mxu0 0.0
    %247 = vmatpush1.xpose.msra.mxu0 0.0
    %248 = vmatprep.subr.mxu0 0.0
    %249 = vmatpush1.xpose.msra.mxu0 0.0
    %250 = vmatprep.subr.mxu0 0.0
    %251 = vmatpush1.xpose.msra.mxu0 0.0
    %252 = vmatprep.subr.mxu0 0.0
    %253 = vmatpush1.xpose.msra.mxu0 0.0
    %254 = vmatprep.subr.mxu0 0.0
    %255 = vmatpush1.xpose.msra.mxu0 0.0
    %256 = vmatprep.subr.mxu0 0.0
    %257 = vmatpush1.xpose.msra.mxu0 0.0
    %258 = vmatprep.mubr.f32.mxu0 0.0
    %259 = vmatmul.mubr.f32.gmra.mrb[0].mxu0 %v168
    %v260 = vpop.f32.mrb[0].mxu0
    %v261 = vadd.f32 %v129, %v260
    %v262 = vpop.f32.mrb[0].mxu0
    %263 = vmatprep.mubr.f32.mxu0 0.0
    %264 = vmatmul.mubr.f32.gmra.mrb[0].mxu0 %v171
    %v265 = vpop.f32.mrb[0].mxu0
    %v266 = vadd.f32 %v134, %v265
    %v267 = vpop.f32.mrb[0].mxu0
    %268 = vmatprep.mubr.f32.mxu0 0.0
    %269 = vmatmul.mubr.f32.gmra.mrb[0].mxu0 %v174
    %v270 = vpop.f32.mrb[0].mxu0
    %v271 = vadd.f32 %v139, %v270
    %v272 = vpop.f32.mrb[0].mxu0
    %273 = vmatprep.mubr.f32.mxu0 0.0
    %274 = vmatmul.mubr.f32.gmra.mrb[0].mxu0 %v177
    %v275 = vpop.f32.mrb[0].mxu0
    %v276 = vadd.f32 %v144, %v275
    %v277 = vpop.f32.mrb[0].mxu0
    %278 = vmatprep.mubr.f32.mxu0 0.0
    %279 = vmatmul.mubr.f32.gmra.mrb[0].mxu0 %v180
    %v280 = vpop.f32.mrb[0].mxu0
    %v281 = vadd.f32 %v149, %v280
    %v282 = vpop.f32.mrb[0].mxu0
    %283 = vmatprep.mubr.f32.mxu0 0.0
    %284 = vmatmul.mubr.f32.gmra.mrb[0].mxu0 %v183
    %v285 = vpop.f32.mrb[0].mxu0
    %v286 = vadd.f32 %v154, %v285
    %v287 = vpop.f32.mrb[0].mxu0
    %288 = vmatprep.mubr.f32.mxu0 0.0
    %289 = vmatmul.mubr.f32.gmra.mrb[0].mxu0 %v186
    %v290 = vpop.f32.mrb[0].mxu0
    %v291 = vadd.f32 %v159, %v290
    %v292 = vpop.f32.mrb[0].mxu0
    %293 = vmatprep.mubr.f32.mxu0 0.0
    %294 = vmatmul.mubr.f32.gmra.mrb[0].mxu0 %v189
    %v295 = vpop.f32.mrb[0].mxu0
    %v296 = vadd.f32 %v164, %v295
    %v297 = vpop.f32.mrb[0].mxu0
    %298 = vdwg.mxu0
    %v299 = vpack.c.bf16 %v266, %v261
    %v300 = vpack.c.bf16 %v276, %v271
    %v301 = vpack.c.bf16 %v286, %v281
    %v302 = vpack.c.bf16 %v296, %v291
    %v303 = vtanh.bf16.pop %v299
    %v304 = vtanh.bf16.pop %v300
    %v305 = vtanh.bf16.pop %v301
    %v306 = vtanh.bf16.pop %v302
    %v307 = vld [vmem:[#allocation9] sm:$0xf]
    %v308 = vld [vmem:[#allocation9 + $0x4] sm:$0xf]
    %v309 = vld [vmem:[#allocation9 + $0x8] sm:$0xf]
    %v310 = vld [vmem:[#allocation9 + $0xc] sm:$0xf]
    %v311 = vld [vmem:[#allocation9 + $0x10] sm:$0xf]
    %v312 = vld [vmem:[#allocation9 + $0x14] sm:$0xf]
    %v313 = vld [vmem:[#allocation9 + $0x18] sm:$0xf]
    %v314 = vld [vmem:[#allocation9 + $0x1c] sm:$0xf]
    %v315 = vld [vmem:[#allocation11] sm:$0xff]
    %v316 = vld [vmem:[#allocation11 + $0x8] sm:$0xff]
    %v317 = vld [vmem:[#allocation11 + $0x10] sm:$0xff]
    %v318 = vld [vmem:[#allocation11 + $0x18] sm:$0xff]
    %v319 = vld [vmem:[#allocation11 + $0x20] sm:$0xff]
    %v320 = vld [vmem:[#allocation11 + $0x28] sm:$0xff]
    %v321 = vld [vmem:[#allocation11 + $0x30] sm:$0xff]
    %v322 = vld [vmem:[#allocation11 + $0x38] sm:$0xff]
    %324 = vset.pattern.permute.xlu0 0
    %325 = vperm.xlu0 %324, %v315
    %v326 = vpop.permute.xlu0 %325
    %329 = vset.pattern.permute.xlu0 0
    %330 = vperm.xlu0 %329, %v316
    %v331 = vpop.permute.xlu0 %330
    %334 = vset.pattern.permute.xlu0 0
    %335 = vperm.xlu0 %334, %v317
    %v336 = vpop.permute.xlu0 %335
    %339 = vset.pattern.permute.xlu0 0
    %340 = vperm.xlu0 %339, %v318
    %v341 = vpop.permute.xlu0 %340
    %344 = vset.pattern.permute.xlu0 0
    %345 = vperm.xlu0 %344, %v319
    %v346 = vpop.permute.xlu0 %345
    %349 = vset.pattern.permute.xlu0 0
    %350 = vperm.xlu0 %349, %v320
    %v351 = vpop.permute.xlu0 %350
    %354 = vset.pattern.permute.xlu0 0
    %355 = vperm.xlu0 %354, %v321
    %v356 = vpop.permute.xlu0 %355
    %359 = vset.pattern.permute.xlu0 0
    %360 = vperm.xlu0 %359, %v322
    %v361 = vpop.permute.xlu0 %360
    %v371 = vunpack.c.l.b16 %v307
    %v372 = vunpack.c.l.b16 %v308
    %v373 = vunpack.c.l.b16 %v309
    %v374 = vunpack.c.l.b16 %v310
    %v375 = vunpack.c.l.b16 %v311
    %v376 = vunpack.c.l.b16 %v312
    %v377 = vunpack.c.l.b16 %v313
    %v378 = vunpack.c.l.b16 %v314
    %v379 = vpack.c.b16 %v372, %v371
    %v380 = vpack.c.b16 %v374, %v373
    %v381 = vpack.c.b16 %v376, %v375
    %v382 = vpack.c.b16 %v378, %v377
    %vm383 = vcmask 523264
    %v385 = vsel %vm383, %v379, 0
    %v388 = vsel %vm383, %v380, 0
    %v391 = vsel %vm383, %v381, 0
    %v394 = vsel %vm383, %v382, 0
    %396 = vmatprep.subr.bf16.mxu0 0
    %397 = vmatpush1.bf16.msra.mxu0 %v303
    %398 = vmatprep.subr.bf16.mxu0 0
    %399 = vmatpush1.bf16.msra.mxu0 %v304
    %400 = vmatprep.subr.bf16.mxu0 0
    %401 = vmatpush1.bf16.msra.mxu0 %v305
    %402 = vmatprep.subr.bf16.mxu0 0
    %403 = vmatpush1.bf16.msra.mxu0 %v306
    %404 = vmatprep.subr.bf16.mxu0 0
    %405 = vmatpush1.bf16.msra.mxu0 0
    %406 = vmatprep.subr.bf16.mxu0 0
    %407 = vmatpush1.bf16.msra.mxu0 0
    %408 = vmatprep.subr.bf16.mxu0 0
    %409 = vmatpush1.bf16.msra.mxu0 0
    %410 = vmatprep.subr.bf16.mxu0 0
    %411 = vmatpush1.bf16.msra.mxu0 0
    %412 = vmatprep.subr.bf16.mxu0 0
    %413 = vmatpush1.bf16.msra.mxu0 0
    %414 = vmatprep.subr.bf16.mxu0 0
    %415 = vmatpush1.bf16.msra.mxu0 0
    %416 = vmatprep.subr.bf16.mxu0 0
    %417 = vmatpush1.bf16.msra.mxu0 0
    %418 = vmatprep.subr.bf16.mxu0 0
    %419 = vmatpush1.bf16.msra.mxu0 0
    %420 = vmatprep.subr.bf16.mxu0 0
    %421 = vmatpush1.bf16.msra.mxu0 0
    %422 = vmatprep.subr.bf16.mxu0 0
    %423 = vmatpush1.bf16.msra.mxu0 0
    %424 = vmatprep.subr.bf16.mxu0 0
    %425 = vmatpush1.bf16.msra.mxu0 0
    %426 = vmatprep.subr.bf16.mxu0 0
    %427 = vmatpush1.bf16.msra.mxu0 0
    %428 = vmatprep.mubr.bf16.mxu0 0
    %429 = vmatmul.mubr.bf16.gmra.mrb[0].mxu0 %v385
    %v430 = vpop.f32.mrb[0].mxu0
    %v431 = vadd.f32 %v326, %v430
    %v432 = vpop.f32.mrb[0].mxu0
    %v433 = vpop.f32.mrb[0].mxu0
    %v434 = vadd.f32 %v331, %v433
    %v435 = vpop.f32.mrb[0].mxu0
    %436 = vmatprep.mubr.bf16.mxu0 0
    %437 = vmatmul.mubr.bf16.gmra.mrb[0].mxu0 %v388
    %v438 = vpop.f32.mrb[0].mxu0
    %v439 = vadd.f32 %v336, %v438
    %v440 = vpop.f32.mrb[0].mxu0
    %v441 = vpop.f32.mrb[0].mxu0
    %v442 = vadd.f32 %v341, %v441
    %v443 = vpop.f32.mrb[0].mxu0
    %444 = vmatprep.mubr.bf16.mxu0 0
    %445 = vmatmul.mubr.bf16.gmra.mrb[0].mxu0 %v391
    %v446 = vpop.f32.mrb[0].mxu0
    %v447 = vadd.f32 %v346, %v446
    %v448 = vpop.f32.mrb[0].mxu0
    %v449 = vpop.f32.mrb[0].mxu0
    %v450 = vadd.f32 %v351, %v449
    %v451 = vpop.f32.mrb[0].mxu0
    %452 = vmatprep.mubr.bf16.mxu0 0
    %453 = vmatmul.mubr.bf16.gmra.mrb[0].mxu0 %v394
    %v454 = vpop.f32.mrb[0].mxu0
    %v455 = vadd.f32 %v356, %v454
    %v456 = vpop.f32.mrb[0].mxu0
    %v457 = vpop.f32.mrb[0].mxu0
    %v458 = vadd.f32 %v361, %v457
    %v459 = vpop.f32.mrb[0].mxu0
    %460 = vdwg.mxu0
    %v461 = vpack.c.bf16 %v434, %v431
    %v462 = vpack.c.bf16 %v442, %v439
    %v463 = vpack.c.bf16 %v450, %v447
    %v464 = vpack.c.bf16 %v458, %v455
    %v465 = vtanh.bf16.pop %v461
    %v466 = vtanh.bf16.pop %v462
    %v467 = vtanh.bf16.pop %v463
    %v468 = vtanh.bf16.pop %v464
    %v469 = vld [vmem:[#allocation12] sm:$0xff]
    %v470 = vld [vmem:[#allocation12 + $0x8] sm:$0xff]
    %v471 = vld [vmem:[#allocation12 + $0x10] sm:$0xff]
    %v472 = vld [vmem:[#allocation12 + $0x18] sm:$0xff]
    %v473 = vld [vmem:[#allocation12 + $0x20] sm:$0xff]
    %v474 = vld [vmem:[#allocation12 + $0x28] sm:$0xff]
    %v475 = vld [vmem:[#allocation12 + $0x30] sm:$0xff]
    %v476 = vld [vmem:[#allocation12 + $0x38] sm:$0xff]
    %v477 = vunpack.c.l.bf16 %v465
    %v478 = vunpack.c.h.bf16 %v465
    %v479 = vunpack.c.l.bf16 %v466
    %v480 = vunpack.c.h.bf16 %v466
    %v481 = vunpack.c.l.bf16 %v467
    %v482 = vunpack.c.h.bf16 %v467
    %v483 = vunpack.c.l.bf16 %v468
    %v484 = vunpack.c.h.bf16 %v468
    %486 = vset.pattern.permute.xlu0 0
    %487 = vperm.xlu0 %486, %v469
    %v488 = vpop.permute.xlu0 %487
    %491 = vset.pattern.permute.xlu0 0
    %492 = vperm.xlu0 %491, %v470
    %v493 = vpop.permute.xlu0 %492
    %496 = vset.pattern.permute.xlu0 0
    %497 = vperm.xlu0 %496, %v471
    %v498 = vpop.permute.xlu0 %497
    %501 = vset.pattern.permute.xlu0 0
    %502 = vperm.xlu0 %501, %v472
    %v503 = vpop.permute.xlu0 %502
    %506 = vset.pattern.permute.xlu0 0
    %507 = vperm.xlu0 %506, %v473
    %v508 = vpop.permute.xlu0 %507
    %511 = vset.pattern.permute.xlu0 0
    %512 = vperm.xlu0 %511, %v474
    %v513 = vpop.permute.xlu0 %512
    %516 = vset.pattern.permute.xlu0 0
    %517 = vperm.xlu0 %516, %v475
    %v518 = vpop.permute.xlu0 %517
    %521 = vset.pattern.permute.xlu0 0
    %522 = vperm.xlu0 %521, %v476
    %v523 = vpop.permute.xlu0 %522
    %v525 = vmul.f32 %v488, %v477
    %v526 = vmul.f32 %v493, %v478
    %v527 = vmul.f32 %v498, %v479
    %v528 = vmul.f32 %v503, %v480
    %v529 = vmul.f32 %v508, %v481
    %v530 = vmul.f32 %v513, %v482
    %v531 = vmul.f32 %v518, %v483
    %v532 = vmul.f32 %v523, %v484
    %vm533 = vcmask 64512
    %v534 = vsel %vm533, %v525, 0.0
    %v535 = vsel %vm533, %v526, 0.0
    %v536 = vadd.f32 %v534, %v535
    %v537 = vsel %vm533, %v527, 0.0
    %v538 = vadd.f32 %v536, %v537
    %v539 = vsel %vm533, %v528, 0.0
    %v540 = vadd.f32 %v538, %v539
    %v541 = vsel %vm533, %v529, 0.0
    %v542 = vadd.f32 %v540, %v541
    %v543 = vsel %vm533, %v530, 0.0
    %v544 = vadd.f32 %v542, %v543
    %v545 = vsel %vm533, %v531, 0.0
    %v546 = vadd.f32 %v544, %v545
    %v547 = vsel %vm533, %v532, 0.0
    %v548 = vadd.f32 %v546, %v547
    %v549 = vrot.slane %v548, 4
    %v550 = vadd.f32 %v548, %v549
    %v551 = vrot.slane %v550, 2
    %v552 = vadd.f32 %v550, %v551
    %v553 = vrot.slane %v552, 1
    %v554 = vadd.f32 %v552, %v553
    %s555 = sld [smem:[#allocation2]]
    %v556 = vstv %s555
    %v557 = vadd.f32 %v554, %v556
    %vm558 = vcmask 57344
    %559 = vst.msk [vmem:[#allocation14] sm:$0x1] %vm558, %v557
    // Predicated region
    $region54: #{tpu_custom_call.1} parent=1 // pred_check
      _
    $region55: #{tpu_custom_call.1} parent=1 // pred_check_branch
      %561 = sbr.rel (0) target = $region57
    $region56: #{tpu_custom_call.1} parent=1 // pred_region
      %s563 = ssub.s32 16, 16
      %564 = vsyncadd [#allocation5], %s563
      %s566 = sshll.u32 [#allocation14], 4
      %s567 = int_to_ptr.vmem [resolvable:$true] %s566
      %569 = dma.vmem_to_hbm [thread:$0]  %s567, 16, %s7, [#allocation5]
    $region57: #{tpu_custom_call.1} parent=1 // pred_fallthru
      _
    // Predicated region
    $region58: #{tpu_custom_call.1} parent=1 // pred_check
      _
    $region59: #{tpu_custom_call.1} parent=1 // pred_check_branch
      %571 = sbr.rel (0) target = $region61
    $region60: #{tpu_custom_call.1} parent=1 // pred_region
      %572 = dma.done [#allocation5], 16
    $region61: #{tpu_custom_call.1} parent=1 // pred_fallthru
      _
    %573 = vsyncpa [#allocation4], 1
    %574 = vsyncpa [#allocation7], 1
    %575 = vsyncpa [#allocation10], 1
    %576 = vsyncpa [#allocation13], 1
    %577 = vsyncpa [#allocation5], 1

</llo_original>
